<compile_context>
chip_gen: v7x
topology: tpu7x:2x2x1
jax: 0.10.0
libtpu: 0.0.40
codegen_flags: <defaults>
</compile_context>

<pallas_src>
import jax
import jax.numpy as jnp
from jax.experimental import pallas as pl
from jax.experimental.pallas import tpu as pltpu


# ---------------------------------------------------------------------------
# Pallas kernel: fused 3-layer MLP on one (tm, 16) batch tile
#   h1 = relu(x @ W1 + b1)        (hidden activation; eval-mode dropout = identity)
#   h2 = relu(h1 @ W2 + b2)
#   y  = sigmoid(h2 @ W3 + b3)
# Weights are bf16 [in, out] at true sizes; biases are one packed f32 [3, 32] tile
# (row 2 holds the 8-wide output bias in its first 8 lanes).
# ---------------------------------------------------------------------------
def _mlp_kernel(x_ref, w1_ref, w2_ref, w3_ref, b_ref, o_ref):
    x = x_ref[...].astype(jnp.bfloat16)     # [tm, 16] (cast to bf16 for the MXU)
    b = b_ref[...]                          # f32 [3, 32]
    n_out = o_ref.shape[-1]                 # 8

    # Layer 1: Linear (bf16 MXU, f32 accum) + bias + ReLU; eval dropout = identity
    h = jnp.dot(x, w1_ref[...], preferred_element_type=jnp.float32)      # [tm, 32]
    h = h + b[0:1, :]
    h = jnp.maximum(h, 0.0)

    # Layer 2: Linear + bias + ReLU; eval dropout = identity
    h = jnp.dot(h.astype(jnp.bfloat16), w2_ref[...],
                preferred_element_type=jnp.float32)                      # [tm, 32]
    h = h + b[1:2, :]
    h = jnp.maximum(h, 0.0)

    # Output layer: Linear + bias + Sigmoid (exp/recip go to the EUP slot)
    y = jnp.dot(h.astype(jnp.bfloat16), w3_ref[...],
                preferred_element_type=jnp.float32)                      # [tm, 8]
    y = y + b[2:3, 0:n_out]
    y = jax.nn.sigmoid(y)

    o_ref[...] = y.astype(o_ref.dtype)


# ---------------------------------------------------------------------------
# One-time parameter prep (hoisted out of the per-call forward path):
#   PyTorch [out, in] weights -> [in, out] bf16; biases packed into one f32 tile.
# ---------------------------------------------------------------------------
def prepare_params(params):
    assert len(params) == 3, "this fused kernel is specialized to 3 layers"
    ws = [jnp.transpose(w).astype(jnp.bfloat16) for (w, _) in params]
    max_out = max(w.shape[0] for (w, _) in params)                       # 32
    b_rows = []
    for (_, b) in params:
        row = jnp.zeros((max_out,), jnp.float32).at[: b.shape[0]].set(
            b.astype(jnp.float32))
        b_rows.append(row)
    b_packed = jnp.stack(b_rows, axis=0)                                 # [3, 32]
    return ws, b_packed


def flexible_nn_forward(x, prepared, *, target_tm=512):
    """Fused MLP forward.

    x: [B, in_features] float32 (un-padded; partial last tile is masked by Pallas)
    prepared: output of prepare_params()
    target_tm: desired batch tile; clamped so the grid has >= 2 steps (v7x has
        2 TensorCores to shard the "parallel" axis across) and rounded to a
        multiple of 8 (sublane granularity).
    """
    ws, b_packed = prepared
    B, f_in = x.shape
    f_out = ws[2].shape[1]

    half8 = ((-(-B // 2)) + 7) // 8 * 8          # cdiv(B, 2) rounded up to mult of 8
    tm = max(8, min(target_tm, half8))
    n_tiles = pl.cdiv(B, tm)

    out = pl.pallas_call(
        _mlp_kernel,
        out_shape=jax.ShapeDtypeStruct((B, f_out), jnp.float32),
        grid_spec=pltpu.PrefetchScalarGridSpec(
            num_scalar_prefetch=0,
            grid=(n_tiles,),
            in_specs=[
                pl.BlockSpec((tm, f_in), lambda i: (i, 0)),       # x tile, pipelined
                pl.BlockSpec(ws[0].shape, lambda i: (0, 0)),      # W1 (VMEM-resident)
                pl.BlockSpec(ws[1].shape, lambda i: (0, 0)),      # W2 (VMEM-resident)
                pl.BlockSpec(ws[2].shape, lambda i: (0, 0)),      # W3 (VMEM-resident)
                pl.BlockSpec(b_packed.shape, lambda i: (0, 0)),   # packed biases
            ],
            out_specs=pl.BlockSpec((tm, f_out), lambda i: (i, 0)),
        ),
        compiler_params=pltpu.CompilerParams(
            dimension_semantics=("parallel",),   # shard batch tiles across TCs (v7x)
        ),
    )(x, *ws, b_packed)
    return out


# ---------------------------------------------------------------------------
# Deterministic parameter init (mimics nn.Linear default: U(-1/sqrt(fan_in), +))
# ---------------------------------------------------------------------------
def init_params(key, layer_sizes):
    params = []
    for i in range(len(layer_sizes) - 1):
        fan_in, fan_out = layer_sizes[i], layer_sizes[i + 1]
        key, kw, kb = jax.random.split(key, 3)
        bound = 1.0 / jnp.sqrt(fan_in)
        W = jax.random.uniform(kw, (fan_out, fan_in), jnp.float32, -bound, bound)
        b = jax.random.uniform(kb, (fan_out,), jnp.float32, -bound, bound)
        params.append((W, b))
    return params


# Pure-JAX f32 reference for correctness checking.
def reference_forward(x, params):
    h = x
    n = len(params)
    for i, (w, b) in enumerate(params):
        h = h @ w.T + b
        if i < n - 1:
            h = jnp.maximum(h, 0.0)   # hidden activation (ReLU); eval dropout = identity
        else:
            h = jax.nn.sigmoid(h)     # output activation
    return h


if __name__ == "__main__":
    # layer_sizes=[16, 32, 32, 8], dropout_rates=[0.1, 0.1] (eval mode -> identity),
    # hidden_layer_activation=ReLU, output_layer_activation=Sigmoid.
    # batch=300 is NOT a multiple of the tile -> exercises the masked partial last
    # block and still yields 2 grid steps for the parallel batch axis.
    layer_sizes = [16, 32, 32, 8]
    batch = 300

    key = jax.random.PRNGKey(0)
    key, kx = jax.random.split(key)
    x = jax.random.normal(kx, (batch, layer_sizes[0]), jnp.float32)
    params = init_params(jax.random.PRNGKey(42), layer_sizes)
    prepared = prepare_params(params)   # one-time weight/bias layout prep

    out = flexible_nn_forward(x, prepared, target_tm=512)
    out = jax.block_until_ready(out)

    ref = reference_forward(x, params)
    assert out.shape == (batch, layer_sizes[-1])
    # bf16 MXU operands with f32 accumulation: tolerance loosened vs. the pure-f32 ref.
    assert jnp.allclose(out, ref, atol=2e-2, rtol=2e-2), "mismatch vs. JAX reference"

    print("KERNEL_OK")
</pallas_src>

<mosaic_0001>
module attributes {stable_mosaic.version = 11 : i64} {
  func.func @_mlp_kernel(%arg0: i32, %arg1: memref<152x16xf32, #tpu.memory_space<vmem>>, %arg2: memref<16x32xbf16, #tpu.memory_space<vmem>>, %arg3: memref<32x32xbf16, #tpu.memory_space<vmem>>, %arg4: memref<32x8xbf16, #tpu.memory_space<vmem>>, %arg5: memref<3x32xf32, #tpu.memory_space<vmem>>, %arg6: memref<152x8xf32, #tpu.memory_space<vmem>>) attributes {dimension_semantics = [#tpu.dimension_semantics<parallel>], iteration_bounds = array<i64: 2>, scalar_prefetch = 0 : i64, scratch_operands = 0 : i64, tpu.core_type = #tpu.core_type<tc>, window_params = [{transform_indices = @transform_0, window_bounds = array<i64: 152, 16>}, {pipeline_mode = #tpu.pipeline_mode<synchronous>, transform_indices = @transform_1, window_bounds = array<i64: 16, 32>}, {pipeline_mode = #tpu.pipeline_mode<synchronous>, transform_indices = @transform_2, window_bounds = array<i64: 32, 32>}, {pipeline_mode = #tpu.pipeline_mode<synchronous>, transform_indices = @transform_3, window_bounds = array<i64: 32, 8>}, {pipeline_mode = #tpu.pipeline_mode<synchronous>, transform_indices = @transform_4, window_bounds = array<i64: 3, 32>}, {transform_indices = @transform_5, window_bounds = array<i64: 152, 8>}]} {
    %c0 = arith.constant 0 : index
    %c0_0 = arith.constant 0 : index
    %0 = vector.load %arg1[%c0, %c0_0] : memref<152x16xf32, #tpu.memory_space<vmem>>, vector<152x16xf32>
    %1 = arith.truncf %0 : vector<152x16xf32> to vector<152x16xbf16>
    %c0_1 = arith.constant 0 : index
    %c0_2 = arith.constant 0 : index
    %2 = vector.load %arg5[%c0_1, %c0_2] : memref<3x32xf32, #tpu.memory_space<vmem>>, vector<3x32xf32>
    %c0_3 = arith.constant 0 : index
    %c0_4 = arith.constant 0 : index
    %3 = vector.load %arg2[%c0_3, %c0_4] : memref<16x32xbf16, #tpu.memory_space<vmem>>, vector<16x32xbf16>
    %cst = arith.constant dense<0.000000e+00> : vector<152x32xf32>
    %4 = tpu.matmul %1, %3, %cst {dimension_numbers = #tpu.dot_dimension_numbers<[1], [0], [0], [1], [0, 0, 1, 1], [], []>} : vector<152x16xbf16>, vector<16x32xbf16>, vector<152x32xf32> -> vector<152x32xf32>
    %5 = vector.extract_strided_slice %2 {offsets = [0, 0], sizes = [1, 32], strides = [1, 1]} : vector<3x32xf32> to vector<1x32xf32>
    %6 = vector.broadcast %5 : vector<1x32xf32> to vector<152x32xf32>
    %7 = arith.addf %4, %6 : vector<152x32xf32>
    %cst_5 = arith.constant 0.000000e+00 : f32
    %8 = vector.broadcast %cst_5 : f32 to vector<152x32xf32>
    %9 = arith.maximumf %7, %8 : vector<152x32xf32>
    %10 = arith.truncf %9 : vector<152x32xf32> to vector<152x32xbf16>
    %c0_6 = arith.constant 0 : index
    %c0_7 = arith.constant 0 : index
    %11 = vector.load %arg3[%c0_6, %c0_7] : memref<32x32xbf16, #tpu.memory_space<vmem>>, vector<32x32xbf16>
    %cst_8 = arith.constant dense<0.000000e+00> : vector<152x32xf32>
    %12 = tpu.matmul %10, %11, %cst_8 {dimension_numbers = #tpu.dot_dimension_numbers<[1], [0], [0], [1], [0, 0, 1, 1], [], []>} : vector<152x32xbf16>, vector<32x32xbf16>, vector<152x32xf32> -> vector<152x32xf32>
    %13 = vector.extract_strided_slice %2 {offsets = [1, 0], sizes = [1, 32], strides = [1, 1]} : vector<3x32xf32> to vector<1x32xf32>
    %14 = vector.broadcast %13 : vector<1x32xf32> to vector<152x32xf32>
    %15 = arith.addf %12, %14 : vector<152x32xf32>
    %cst_9 = arith.constant 0.000000e+00 : f32
    %16 = vector.broadcast %cst_9 : f32 to vector<152x32xf32>
    %17 = arith.maximumf %15, %16 : vector<152x32xf32>
    %18 = arith.truncf %17 : vector<152x32xf32> to vector<152x32xbf16>
    %c0_10 = arith.constant 0 : index
    %c0_11 = arith.constant 0 : index
    %19 = vector.load %arg4[%c0_10, %c0_11] : memref<32x8xbf16, #tpu.memory_space<vmem>>, vector<32x8xbf16>
    %cst_12 = arith.constant dense<0.000000e+00> : vector<152x8xf32>
    %20 = tpu.matmul %18, %19, %cst_12 {dimension_numbers = #tpu.dot_dimension_numbers<[1], [0], [0], [1], [0, 0, 1, 1], [], []>} : vector<152x32xbf16>, vector<32x8xbf16>, vector<152x8xf32> -> vector<152x8xf32>
    %21 = vector.extract_strided_slice %2 {offsets = [2, 0], sizes = [1, 8], strides = [1, 1]} : vector<3x32xf32> to vector<1x8xf32>
    %22 = vector.broadcast %21 : vector<1x8xf32> to vector<152x8xf32>
    %23 = arith.addf %20, %22 : vector<152x8xf32>
    %24 = arith.negf %23 : vector<152x8xf32>
    %25 = math.exp %24 : vector<152x8xf32>
    %cst_13 = arith.constant 1.000000e+00 : f32
    %26 = vector.broadcast %cst_13 : f32 to vector<152x8xf32>
    %27 = arith.addf %26, %25 : vector<152x8xf32>
    %28 = arith.divf %26, %27 : vector<152x8xf32>
    %c0_14 = arith.constant 0 : index
    %c0_15 = arith.constant 0 : index
    %29 = vector.load %arg6[%c0_14, %c0_15] : memref<152x8xf32, #tpu.memory_space<vmem>>, vector<152x8xf32>
    tpu.vector_store %arg6[%c0_14, %c0_15], %28 {strides = array<i32>} : memref<152x8xf32, #tpu.memory_space<vmem>>, vector<152x8xf32>,
    return
  }
  func.func @transform_0(%arg0: i32) -> (i32, i32) {
    %c0_i32 = arith.constant 0 : i32
    %c0_i32_0 = arith.constant 0 : i32
    return %arg0, %c0_i32 : i32, i32
  }
  func.func @transform_1(%arg0: i32) -> (i32, i32) {
    %c0_i32 = arith.constant 0 : i32
    %c0_i32_0 = arith.constant 0 : i32
    %c0_i32_1 = arith.constant 0 : i32
    return %c0_i32, %c0_i32_0 : i32, i32
  }
  func.func @transform_2(%arg0: i32) -> (i32, i32) {
    %c0_i32 = arith.constant 0 : i32
    %c0_i32_0 = arith.constant 0 : i32
    %c0_i32_1 = arith.constant 0 : i32
    return %c0_i32, %c0_i32_0 : i32, i32
  }
  func.func @transform_3(%arg0: i32) -> (i32, i32) {
    %c0_i32 = arith.constant 0 : i32
    %c0_i32_0 = arith.constant 0 : i32
    %c0_i32_1 = arith.constant 0 : i32
    return %c0_i32, %c0_i32_0 : i32, i32
  }
  func.func @transform_4(%arg0: i32) -> (i32, i32) {
    %c0_i32 = arith.constant 0 : i32
    %c0_i32_0 = arith.constant 0 : i32
    %c0_i32_1 = arith.constant 0 : i32
    return %c0_i32, %c0_i32_0 : i32, i32
  }
  func.func @transform_5(%arg0: i32) -> (i32, i32) {
    %c0_i32 = arith.constant 0 : i32
    %c0_i32_0 = arith.constant 0 : i32
    return %arg0, %c0_i32 : i32, i32
  }
}

</mosaic_0001>

<llo_original>
// kernel: tpu_custom_call.1
$region0: #{tpu_custom_call.1}
  #allocation0 [shape = 'u32[]', space=smem, size = 0x4, offset = 0x4, fixed_abs, tag = 'smem constant byte address 0x4 - core index']
  #allocation1 [shape = 'u32[144,128]{1,0:T(1,128)}', space=vmem, size = 0x12000, scoped, tag = 'internal scratch']
  %s0 = inlined_call_operand.vmem [shape: f32[300,16], index: 0, kind: input, shape index: {}]
  %s1 = inlined_call_operand.vmem [shape: bf16[16,32], index: 1, kind: input, shape index: {}]
  %s2 = inlined_call_operand.vmem [shape: bf16[32,32], index: 2, kind: input, shape index: {}]
  %s3 = inlined_call_operand.vmem [shape: bf16[32,8], index: 3, kind: input, shape index: {}]
  %s4 = inlined_call_operand.vmem [shape: f32[3,32], index: 4, kind: input, shape index: {}]
  %s5 = inlined_call_operand.vmem [shape: f32[300,8], index: 5, kind: output, shape index: {}]
  %s6 = sld [smem:[#allocation0]]
  $region53: #{tpu_custom_call.1} parent=0
    _
  %s8 = ssub.s32 1, %s6
  %s9 = scalar_select 0, %s8, %s6
  loop: start=0, step=1, limit=4
  $region2: #{tpu_custom_call.1} parent=0 // loop_pre_header
    _
  $region3: #{tpu_custom_call.1} parent=0 // loop_header
    %s11 = sphi 0, %s15
    %p12 = scmp.ge.s32.totalorder %s11, 4
    %s21 = sphi 0, %s23
    %s24 = sphi 0, %s21
    %s25 = sphi 0, %s24
    %s41 = sphi 0, %s25
    %s45 = sphi 0, %s45
    %s47 = sphi 0, %s45
    %s48 = sphi 0, %s47
    %s62 = sphi 0, %s48
    %s66 = sphi 0, %s66
    %s68 = sphi 0, %s66
    %s69 = sphi 0, %s68
    %s83 = sphi 0, %s69
    %s87 = sphi 0, %s87
    %s89 = sphi 0, %s87
    %s90 = sphi 0, %s89
    %s104 = sphi 0, %s90
    %s108 = sphi 0, %s108
    %s110 = sphi 0, %s108
    %s111 = sphi 0, %s110
    %s125 = sphi 0, %s111
    %s131 = sphi 0, %s133
    %s134 = sphi 0, %s131
    %s135 = sphi 0, %s134
    %s151 = sphi 0, %s135
  $region4: #{tpu_custom_call.1} parent=0 // loop_header_branch
    %14 = sbr.rel (%p12) target = $region8
  $region5: #{tpu_custom_call.1} parent=0 // loop_body
    %s16 = ssub.s32 %s11, 1
    %s17 = ssub.s32 %s11, 2
    %s18 = sadd.s32 %s11, 1
    %s19 = ssub.s32 %s11, %s18
    %p20 = scmp.eq.s32.totalorder %s19, 0
    %s22 = sadd.s32 %s21, 1
    %s23 = scalar_select %p20, %s21, %s22
    %p26 = pneg %p20
    %p27 = scmp.eq.s32.totalorder %s11, 1
    %p28 = por %p26, %p27
    %p29 = scmp.ne.s32.totalorder %s21, %s24
    %p30 = scmp.eq.s32.totalorder %s11, 0
    %p31 = por %p29, %p30
    %p32 = scmp.ne.s32.totalorder %s21, %s24
    %p33 = scmp.eq.s32.totalorder %s16, 1
    %p34 = por %p32, %p33
    %p35 = scmp.ne.s32.totalorder %s24, %s25
    %p36 = scmp.eq.s32.totalorder %s16, 0
    %p37 = por %p35, %p36
    %p38 = scmp.ne.s32.totalorder %s24, %s25
    %p39 = scmp.eq.s32.totalorder %s17, 1
    %p40 = por %p38, %p39
    %p42 = scmp.ne.s32.totalorder %s25, %s41
    %p43 = scmp.eq.s32.totalorder %s17, 0
    %p44 = por %p42, %p43
    %s46 = sadd.s32 %s45, 1
    %p49 = scmp.eq.s32.totalorder %s11, 1
    %p50 = scmp.ne.s32.totalorder %s45, %s47
    %p51 = scmp.eq.s32.totalorder %s11, 0
    %p52 = por %p50, %p51
    %p53 = scmp.ne.s32.totalorder %s45, %s47
    %p54 = scmp.eq.s32.totalorder %s16, 1
    %p55 = por %p53, %p54
    %p56 = scmp.ne.s32.totalorder %s47, %s48
    %p57 = scmp.eq.s32.totalorder %s16, 0
    %p58 = por %p56, %p57
    %p59 = scmp.ne.s32.totalorder %s47, %s48
    %p60 = scmp.eq.s32.totalorder %s17, 1
    %p61 = por %p59, %p60
    %p63 = scmp.ne.s32.totalorder %s48, %s62
    %p64 = scmp.eq.s32.totalorder %s17, 0
    %p65 = por %p63, %p64
    %s67 = sadd.s32 %s66, 1
    %p70 = scmp.eq.s32.totalorder %s11, 1
    %p71 = scmp.ne.s32.totalorder %s66, %s68
    %p72 = scmp.eq.s32.totalorder %s11, 0
    %p73 = por %p71, %p72
    %p74 = scmp.ne.s32.totalorder %s66, %s68
    %p75 = scmp.eq.s32.totalorder %s16, 1
    %p76 = por %p74, %p75
    %p77 = scmp.ne.s32.totalorder %s68, %s69
    %p78 = scmp.eq.s32.totalorder %s16, 0
    %p79 = por %p77, %p78
    %p80 = scmp.ne.s32.totalorder %s68, %s69
    %p81 = scmp.eq.s32.totalorder %s17, 1
    %p82 = por %p80, %p81
    %p84 = scmp.ne.s32.totalorder %s69, %s83
    %p85 = scmp.eq.s32.totalorder %s17, 0
    %p86 = por %p84, %p85
    %s88 = sadd.s32 %s87, 1
    %p91 = scmp.eq.s32.totalorder %s11, 1
    %p92 = scmp.ne.s32.totalorder %s87, %s89
    %p93 = scmp.eq.s32.totalorder %s11, 0
    %p94 = por %p92, %p93
    %p95 = scmp.ne.s32.totalorder %s87, %s89
    %p96 = scmp.eq.s32.totalorder %s16, 1
    %p97 = por %p95, %p96
    %p98 = scmp.ne.s32.totalorder %s89, %s90
    %p99 = scmp.eq.s32.totalorder %s16, 0
    %p100 = por %p98, %p99
    %p101 = scmp.ne.s32.totalorder %s89, %s90
    %p102 = scmp.eq.s32.totalorder %s17, 1
    %p103 = por %p101, %p102
    %p105 = scmp.ne.s32.totalorder %s90, %s104
    %p106 = scmp.eq.s32.totalorder %s17, 0
    %p107 = por %p105, %p106
    %s109 = sadd.s32 %s108, 1
    %p112 = scmp.eq.s32.totalorder %s11, 1
    %p113 = scmp.ne.s32.totalorder %s108, %s110
    %p114 = scmp.eq.s32.totalorder %s11, 0
    %p115 = por %p113, %p114
    %p116 = scmp.ne.s32.totalorder %s108, %s110
    %p117 = scmp.eq.s32.totalorder %s16, 1
    %p118 = por %p116, %p117
    %p119 = scmp.ne.s32.totalorder %s110, %s111
    %p120 = scmp.eq.s32.totalorder %s16, 0
    %p121 = por %p119, %p120
    %p122 = scmp.ne.s32.totalorder %s110, %s111
    %p123 = scmp.eq.s32.totalorder %s17, 1
    %p124 = por %p122, %p123
    %p126 = scmp.ne.s32.totalorder %s111, %s125
    %p127 = scmp.eq.s32.totalorder %s17, 0
    %p128 = por %p126, %p127
    %s129 = ssub.s32 %s11, %s18
    %p130 = scmp.eq.s32.totalorder %s129, 0
    %s132 = sadd.s32 %s131, 1
    %s133 = scalar_select %p130, %s131, %s132
    %p136 = pneg %p130
    %p137 = scmp.eq.s32.totalorder %s11, 1
    %p138 = por %p136, %p137
    %p139 = scmp.ne.s32.totalorder %s131, %s134
    %p140 = scmp.eq.s32.totalorder %s11, 0
    %p141 = por %p139, %p140
    %p142 = scmp.ne.s32.totalorder %s131, %s134
    %p143 = scmp.eq.s32.totalorder %s16, 1
    %p144 = por %p142, %p143
    %p145 = scmp.ne.s32.totalorder %s134, %s135
    %p146 = scmp.eq.s32.totalorder %s16, 0
    %p147 = por %p145, %p146
    %p148 = scmp.ne.s32.totalorder %s134, %s135
    %p149 = scmp.eq.s32.totalorder %s17, 1
    %p150 = por %p148, %p149
    %p152 = scmp.ne.s32.totalorder %s135, %s151
    %p153 = scmp.eq.s32.totalorder %s17, 0
    %p154 = por %p152, %p153
    %p155 = scmp.le.s32.totalorder 1, %s11
    %p156 = scmp.lt.s32.totalorder %s11, 3
    %p157 = pnand %p155, %p156
    %p158 = pneg %p157
    // Predicated region
    $region9: #{tpu_custom_call.1} parent=5 // pred_check
      _
    $region10: #{tpu_custom_call.1} parent=5 // pred_check_branch
      %160 = sbr.rel (%p157) target = $region12
    $region11: #{tpu_custom_call.1} parent=5 // pred_region
      %s161 = ssub.s32 %s11, 1
      // Predicated region
      $region13: #{tpu_custom_call.1} parent=11 // pred_check
        %p162 = pneg %p58
      $region14: #{tpu_custom_call.1} parent=11 // pred_check_branch
        %164 = sbr.rel (%p162) target = $region16
      $region15: #{tpu_custom_call.1} parent=11 // pred_region
        _
      $region16: #{tpu_custom_call.1} parent=11 // pred_fallthru
        _
      // Predicated region
      $region17: #{tpu_custom_call.1} parent=11 // pred_check
        %p165 = pneg %p79
      $region18: #{tpu_custom_call.1} parent=11 // pred_check_branch
        %167 = sbr.rel (%p165) target = $region20
      $region19: #{tpu_custom_call.1} parent=11 // pred_region
        _
      $region20: #{tpu_custom_call.1} parent=11 // pred_fallthru
        _
      // Predicated region
      $region21: #{tpu_custom_call.1} parent=11 // pred_check
        %p168 = pneg %p100
      $region22: #{tpu_custom_call.1} parent=11 // pred_check_branch
        %170 = sbr.rel (%p168) target = $region24
      $region23: #{tpu_custom_call.1} parent=11 // pred_region
        _
      $region24: #{tpu_custom_call.1} parent=11 // pred_fallthru
        _
      // Predicated region
      $region25: #{tpu_custom_call.1} parent=11 // pred_check
        %p171 = pneg %p121
      $region26: #{tpu_custom_call.1} parent=11 // pred_check_branch
        %173 = sbr.rel (%p171) target = $region28
      $region27: #{tpu_custom_call.1} parent=11 // pred_region
        _
      $region28: #{tpu_custom_call.1} parent=11 // pred_fallthru
        _
    $region12: #{tpu_custom_call.1} parent=5 // pred_fallthru
      _
    %p174 = scmp.lt.s32.totalorder %s11, 2
    // Predicated region
    $region29: #{tpu_custom_call.1} parent=5 // pred_check
      %p175 = pneg %p174
    $region30: #{tpu_custom_call.1} parent=5 // pred_check_branch
      %177 = sbr.rel (%p175) target = $region32
    $region31: #{tpu_custom_call.1} parent=5 // pred_region
      // Predicated region
      $region33: #{tpu_custom_call.1} parent=31 // pred_check
        %p178 = pneg %p31
      $region34: #{tpu_custom_call.1} parent=31 // pred_check_branch
        %180 = sbr.rel (%p178) target = $region36
      $region35: #{tpu_custom_call.1} parent=31 // pred_region
        %s181 = smul.u32 19, %s11
        %p182 = scmp.lt.s32.totalorder %s181, 37
        %s183 = scalar_select %p182, %s181, 37
        %s184 = smul.addr %s183, 8
        %s185 = scalar_lea.vmem %s0, %s184
        %s186 = smul.u32 19, %s11
      $region36: #{tpu_custom_call.1} parent=31 // pred_fallthru
        _
    $region32: #{tpu_custom_call.1} parent=5 // pred_fallthru
      _
    %p187 = scmp.le.s32.totalorder 1, %s11
    %p188 = scmp.lt.s32.totalorder %s11, 3
    %p189 = pnand %p187, %p188
    %p190 = pneg %p189
    // Predicated region
    $region37: #{tpu_custom_call.1} parent=5 // pred_check
      _
    $region38: #{tpu_custom_call.1} parent=5 // pred_check_branch
      %192 = sbr.rel (%p189) target = $region40
    $region39: #{tpu_custom_call.1} parent=5 // pred_region
      %s193 = ssub.s32 %s11, 1
      %s194 = smul.u32 19, %s16
      %p195 = scmp.lt.s32.totalorder %s194, 37
      %s196 = scalar_select %p195, %s194, 37
      %s197 = smul.addr %s196, 8
      %s198 = scalar_lea.vmem %s0, %s197
      %p199 = pneg %p37
      %p200 = pneg %p34
      %p201 = pneg %p58
      %p202 = pneg %p55
      %p203 = pneg %p79
      %p204 = pneg %p76
      %p205 = pneg %p100
      %p206 = pneg %p97
      %p207 = pneg %p121
      %p208 = pneg %p118
      %p209 = pneg %p147
      %p210 = pneg %p144
      %s211 = smul.u32 19, %s16
      %p212 = scmp.lt.s32.totalorder %s211, 37
      %s213 = scalar_select %p212, %s211, 37
      %s214 = smul.addr %s213, 8
      %s215 = scalar_lea.vmem %s5, %s214
      %s216 = smul.u32 19, %s16
      %p217 = scmp.lt.s32.totalorder %s216, 37
      %s218 = scalar_select %p217, %s216, 37
      %s219 = smul.addr %s218, 8
      %s220 = scalar_lea.vmem %s0, %s219
      %s221 = smul.u32 19, %s16
      %s222 = smul.u32 19, %s16
      %p223 = scmp.lt.s32.totalorder %s222, 37
      %s224 = scalar_select %p223, %s222, 37
      %s225 = smul.addr %s224, 8
      %s226 = scalar_lea.vmem %s5, %s225
      %s227 = smul.u32 19, %s16
      %v229 = vld [vmem:[%s220] sm:$0xff]
      %v230 = vld [vmem:[%s220 + $0x8] sm:$0xff]
      %v231 = vld [vmem:[%s220 + $0x10] sm:$0xff]
      %v232 = vld [vmem:[%s220 + $0x18] sm:$0xff]
      %v233 = vld [vmem:[%s220 + $0x20] sm:$0xff]
      %v234 = vld [vmem:[%s220 + $0x28] sm:$0xff]
      %v235 = vld [vmem:[%s220 + $0x30] sm:$0xff]
      %v236 = vld [vmem:[%s220 + $0x38] sm:$0xff]
      %v237 = vld [vmem:[%s220 + $0x40] sm:$0xff]
      %v238 = vld [vmem:[%s220 + $0x48] sm:$0xff]
      %v239 = vld [vmem:[%s220 + $0x50] sm:$0xff]
      %v240 = vld [vmem:[%s220 + $0x58] sm:$0xff]
      %v241 = vld [vmem:[%s220 + $0x60] sm:$0xff]
      %v242 = vld [vmem:[%s220 + $0x68] sm:$0xff]
      %v243 = vld [vmem:[%s220 + $0x70] sm:$0xff]
      %v244 = vld [vmem:[%s220 + $0x78] sm:$0xff]
      %v245 = vld [vmem:[%s220 + $0x80] sm:$0xff]
      %v246 = vld [vmem:[%s220 + $0x88] sm:$0xff]
      %v247 = vld [vmem:[%s220 + $0x90] sm:$0xff]
      %v248 = vpack.c.bf16 %v230, %v229
      %v249 = vpack.c.bf16 %v232, %v231
      %v250 = vpack.c.bf16 %v234, %v233
      %v251 = vpack.c.bf16 %v236, %v235
      %v252 = vpack.c.bf16 %v238, %v237
      %v253 = vpack.c.bf16 %v240, %v239
      %v254 = vpack.c.bf16 %v242, %v241
      %v255 = vpack.c.bf16 %v244, %v243
      %v256 = vpack.c.bf16 %v246, %v245
      %v257 = vpack.c.bf16 %v247, %v247
      %v258 = vld [vmem:[%s4] sm:$0x7]
      %v259 = vld [vmem:[%s1] sm:$0xf]
      %v260 = vld [vmem:[%s1 + $0x4] sm:$0xf]
      %v261 = vlaneseq
      %v262 = vshrl.u32 %v261, 7
      %v263 = vsub.s32 0, %v262
      %v264 = vrot.slane %v258, %v263
      %v267 = vunpack.c.l.b16 %v259
      %v268 = vunpack.c.l.b16 %v260
      %v269 = vpack.c.b16 %v268, %v267
      %vm271 = vcmask 130048
      %v273 = vsel %vm271, %v248, 0
      %v276 = vsel %vm271, %v249, 0
      %v279 = vsel %vm271, %v250, 0
      %v282 = vsel %vm271, %v251, 0
      %v285 = vsel %vm271, %v252, 0
      %v288 = vsel %vm271, %v253, 0
      %v291 = vsel %vm271, %v254, 0
      %v294 = vsel %vm271, %v255, 0
      %v297 = vsel %vm271, %v256, 0
      %v300 = vsel %vm271, %v257, 0
      %302 = vmatprep.subr.bf16.mxu0 0
      %303 = vmatpush1.bf16.msra.mxu0 %v269
      %304 = vmatprep.subr.bf16.mxu0 0
      %305 = vmatpush1.bf16.msra.mxu0 0
      %306 = vmatprep.subr.bf16.mxu0 0
      %307 = vmatpush1.bf16.msra.mxu0 0
      %308 = vmatprep.subr.bf16.mxu0 0
      %309 = vmatpush1.bf16.msra.mxu0 0
      %310 = vmatprep.subr.bf16.mxu0 0
      %311 = vmatpush1.bf16.msra.mxu0 0
      %312 = vmatprep.subr.bf16.mxu0 0
      %313 = vmatpush1.bf16.msra.mxu0 0
      %314 = vmatprep.subr.bf16.mxu0 0
      %315 = vmatpush1.bf16.msra.mxu0 0
      %316 = vmatprep.subr.bf16.mxu0 0
      %317 = vmatpush1.bf16.msra.mxu0 0
      %318 = vmatprep.subr.bf16.mxu0 0
      %319 = vmatpush1.bf16.msra.mxu0 0
      %320 = vmatprep.subr.bf16.mxu0 0
      %321 = vmatpush1.bf16.msra.mxu0 0
      %322 = vmatprep.subr.bf16.mxu0 0
      %323 = vmatpush1.bf16.msra.mxu0 0
      %324 = vmatprep.subr.bf16.mxu0 0
      %325 = vmatpush1.bf16.msra.mxu0 0
      %326 = vmatprep.subr.bf16.mxu0 0
      %327 = vmatpush1.bf16.msra.mxu0 0
      %328 = vmatprep.subr.bf16.mxu0 0
      %329 = vmatpush1.bf16.msra.mxu0 0
      %330 = vmatprep.subr.bf16.mxu0 0
      %331 = vmatpush1.bf16.msra.mxu0 0
      %332 = vmatprep.subr.bf16.mxu0 0
      %333 = vmatpush1.bf16.msra.mxu0 0
      %334 = vmatprep.mubr.bf16.mxu0 0
      %335 = vmatmul.mubr.bf16.gmra.mrb[0].mxu0 %v273
      %v336 = vpop.f32.mrb[0].mxu0
      %v337 = vadd.f32 %v264, %v336
      %v338 = vpop.f32.mrb[0].mxu0
      %v339 = vpop.f32.mrb[0].mxu0
      %v340 = vadd.f32 %v264, %v339
      %v341 = vpop.f32.mrb[0].mxu0
      %342 = vmatprep.mubr.bf16.mxu0 0
      %343 = vmatmul.mubr.bf16.gmra.mrb[0].mxu0 %v276
      %v344 = vpop.f32.mrb[0].mxu0
      %v345 = vadd.f32 %v264, %v344
      %v346 = vpop.f32.mrb[0].mxu0
      %v347 = vpop.f32.mrb[0].mxu0
      %v348 = vadd.f32 %v264, %v347
      %v349 = vpop.f32.mrb[0].mxu0
      %350 = vmatprep.mubr.bf16.mxu0 0
      %351 = vmatmul.mubr.bf16.gmra.mrb[0].mxu0 %v279
      %v352 = vpop.f32.mrb[0].mxu0
      %v353 = vadd.f32 %v264, %v352
      %v354 = vpop.f32.mrb[0].mxu0
      %v355 = vpop.f32.mrb[0].mxu0
      %v356 = vadd.f32 %v264, %v355
      %v357 = vpop.f32.mrb[0].mxu0
      %358 = vmatprep.mubr.bf16.mxu0 0
      %359 = vmatmul.mubr.bf16.gmra.mrb[0].mxu0 %v282
      %v360 = vpop.f32.mrb[0].mxu0
      %v361 = vadd.f32 %v264, %v360
      %v362 = vpop.f32.mrb[0].mxu0
      %v363 = vpop.f32.mrb[0].mxu0
      %v364 = vadd.f32 %v264, %v363
      %v365 = vpop.f32.mrb[0].mxu0
      %366 = vmatprep.mubr.bf16.mxu0 0
      %367 = vmatmul.mubr.bf16.gmra.mrb[0].mxu0 %v285
      %v368 = vpop.f32.mrb[0].mxu0
      %v369 = vadd.f32 %v264, %v368
      %v370 = vpop.f32.mrb[0].mxu0
      %v371 = vpop.f32.mrb[0].mxu0
      %v372 = vadd.f32 %v264, %v371
      %v373 = vpop.f32.mrb[0].mxu0
      %374 = vmatprep.mubr.bf16.mxu0 0
      %375 = vmatmul.mubr.bf16.gmra.mrb[0].mxu0 %v288
      %v376 = vpop.f32.mrb[0].mxu0
      %v377 = vadd.f32 %v264, %v376
      %v378 = vpop.f32.mrb[0].mxu0
      %v379 = vpop.f32.mrb[0].mxu0
      %v380 = vadd.f32 %v264, %v379
      %v381 = vpop.f32.mrb[0].mxu0
      %382 = vmatprep.mubr.bf16.mxu0 0
      %383 = vmatmul.mubr.bf16.gmra.mrb[0].mxu0 %v291
      %v384 = vpop.f32.mrb[0].mxu0
      %v385 = vadd.f32 %v264, %v384
      %v386 = vpop.f32.mrb[0].mxu0
      %v387 = vpop.f32.mrb[0].mxu0
      %v388 = vadd.f32 %v264, %v387
      %v389 = vpop.f32.mrb[0].mxu0
      %390 = vmatprep.mubr.bf16.mxu0 0
      %391 = vmatmul.mubr.bf16.gmra.mrb[0].mxu0 %v294
      %v392 = vpop.f32.mrb[0].mxu0
      %v393 = vadd.f32 %v264, %v392
      %v394 = vpop.f32.mrb[0].mxu0
      %v395 = vpop.f32.mrb[0].mxu0
      %v396 = vadd.f32 %v264, %v395
      %v397 = vpop.f32.mrb[0].mxu0
      %398 = vmatprep.mubr.bf16.mxu0 0
      %399 = vmatmul.mubr.bf16.gmra.mrb[0].mxu0 %v297
      %v400 = vpop.f32.mrb[0].mxu0
      %v401 = vadd.f32 %v264, %v400
      %v402 = vpop.f32.mrb[0].mxu0
      %v403 = vpop.f32.mrb[0].mxu0
      %v404 = vadd.f32 %v264, %v403
      %v405 = vpop.f32.mrb[0].mxu0
      %406 = vmatprep.mubr.bf16.mxu0 0
      %407 = vmatmul.mubr.bf16.gmra.mrb[0].mxu0 %v300
      %v408 = vpop.f32.mrb[0].mxu0
      %v409 = vadd.f32 %v264, %v408
      %v410 = vpop.f32.mrb[0].mxu0
      %v411 = vpop.f32.mrb[0].mxu0
      %v412 = vpop.f32.mrb[0].mxu0
      %413 = vdwg.mxu0
      %v414 = vmax.f32 %v337, 0.0
      %v415 = vmax.f32 %v340, 0.0
      %v416 = vmax.f32 %v345, 0.0
      %v417 = vmax.f32 %v348, 0.0
      %v418 = vmax.f32 %v353, 0.0
      %v419 = vmax.f32 %v356, 0.0
      %v420 = vmax.f32 %v361, 0.0
      %v421 = vmax.f32 %v364, 0.0
      %v422 = vmax.f32 %v369, 0.0
      %v423 = vmax.f32 %v372, 0.0
      %v424 = vmax.f32 %v377, 0.0
      %v425 = vmax.f32 %v380, 0.0
      %v426 = vmax.f32 %v385, 0.0
      %v427 = vmax.f32 %v388, 0.0
      %v428 = vmax.f32 %v393, 0.0
      %v429 = vmax.f32 %v396, 0.0
      %v430 = vmax.f32 %v401, 0.0
      %v431 = vmax.f32 %v404, 0.0
      %v432 = vmax.f32 %v409, 0.0
      %v433 = vpack.c.bf16 %v415, %v414
      %v434 = vpack.c.bf16 %v417, %v416
      %v435 = vpack.c.bf16 %v419, %v418
      %v436 = vpack.c.bf16 %v421, %v420
      %v437 = vpack.c.bf16 %v423, %v422
      %v438 = vpack.c.bf16 %v425, %v424
      %v439 = vpack.c.bf16 %v427, %v426
      %v440 = vpack.c.bf16 %v429, %v428
      %v441 = vpack.c.bf16 %v431, %v430
      %v442 = vpack.c.bf16 %v432, %v432
      %v443 = vld [vmem:[%s2] sm:$0xf]
      %v444 = vld [vmem:[%s2 + $0x4] sm:$0xf]
      %v445 = vld [vmem:[%s2 + $0x8] sm:$0xf]
      %v446 = vld [vmem:[%s2 + $0xc] sm:$0xf]
      %v447 = vlaneseq
      %v448 = vshrl.u32 %v447, 7
      %v449 = vsub.s32 1, %v448
      %v450 = vrot.slane %v258, %v449
      %v455 = vunpack.c.l.b16 %v443
      %v456 = vunpack.c.l.b16 %v444
      %v457 = vunpack.c.l.b16 %v445
      %v458 = vunpack.c.l.b16 %v446
      %v459 = vpack.c.b16 %v456, %v455
      %v460 = vpack.c.b16 %v458, %v457
      %vm463 = vcmask 261120
      %v465 = vsel %vm463, %v433, 0
      %v468 = vsel %vm463, %v434, 0
      %v471 = vsel %vm463, %v435, 0
      %v474 = vsel %vm463, %v436, 0
      %v477 = vsel %vm463, %v437, 0
      %v480 = vsel %vm463, %v438, 0
      %v483 = vsel %vm463, %v439, 0
      %v486 = vsel %vm463, %v440, 0
      %v489 = vsel %vm463, %v441, 0
      %v492 = vsel %vm463, %v442, 0
      %494 = vmatprep.subr.bf16.mxu0 0
      %495 = vmatpush1.bf16.msra.mxu0 %v459
      %496 = vmatprep.subr.bf16.mxu0 0
      %497 = vmatpush1.bf16.msra.mxu0 %v460
      %498 = vmatprep.subr.bf16.mxu0 0
      %499 = vmatpush1.bf16.msra.mxu0 0
      %500 = vmatprep.subr.bf16.mxu0 0
      %501 = vmatpush1.bf16.msra.mxu0 0
      %502 = vmatprep.subr.bf16.mxu0 0
      %503 = vmatpush1.bf16.msra.mxu0 0
      %504 = vmatprep.subr.bf16.mxu0 0
      %505 = vmatpush1.bf16.msra.mxu0 0
      %506 = vmatprep.subr.bf16.mxu0 0
      %507 = vmatpush1.bf16.msra.mxu0 0
      %508 = vmatprep.subr.bf16.mxu0 0
      %509 = vmatpush1.bf16.msra.mxu0 0
      %510 = vmatprep.subr.bf16.mxu0 0
      %511 = vmatpush1.bf16.msra.mxu0 0
      %512 = vmatprep.subr.bf16.mxu0 0
      %513 = vmatpush1.bf16.msra.mxu0 0
      %514 = vmatprep.subr.bf16.mxu0 0
      %515 = vmatpush1.bf16.msra.mxu0 0
      %516 = vmatprep.subr.bf16.mxu0 0
      %517 = vmatpush1.bf16.msra.mxu0 0
      %518 = vmatprep.subr.bf16.mxu0 0
      %519 = vmatpush1.bf16.msra.mxu0 0
      %520 = vmatprep.subr.bf16.mxu0 0
      %521 = vmatpush1.bf16.msra.mxu0 0
      %522 = vmatprep.subr.bf16.mxu0 0
      %523 = vmatpush1.bf16.msra.mxu0 0
      %524 = vmatprep.subr.bf16.mxu0 0
      %525 = vmatpush1.bf16.msra.mxu0 0
      %526 = vmatprep.mubr.bf16.mxu0 0
      %527 = vmatmul.mubr.bf16.gmra.mrb[0].mxu0 %v465
      %v528 = vpop.f32.mrb[0].mxu0
      %v529 = vadd.f32 %v450, %v528
      %v530 = vpop.f32.mrb[0].mxu0
      %v531 = vpop.f32.mrb[0].mxu0
      %v532 = vadd.f32 %v450, %v531
      %v533 = vpop.f32.mrb[0].mxu0
      %534 = vmatprep.mubr.bf16.mxu0 0
      %535 = vmatmul.mubr.bf16.gmra.mrb[0].mxu0 %v468
      %v536 = vpop.f32.mrb[0].mxu0
      %v537 = vadd.f32 %v450, %v536
      %v538 = vpop.f32.mrb[0].mxu0
      %v539 = vpop.f32.mrb[0].mxu0
      %v540 = vadd.f32 %v450, %v539
      %v541 = vpop.f32.mrb[0].mxu0
      %542 = vmatprep.mubr.bf16.mxu0 0
      %543 = vmatmul.mubr.bf16.gmra.mrb[0].mxu0 %v471
      %v544 = vpop.f32.mrb[0].mxu0
      %v545 = vadd.f32 %v450, %v544
      %v546 = vpop.f32.mrb[0].mxu0
      %v547 = vpop.f32.mrb[0].mxu0
      %v548 = vadd.f32 %v450, %v547
      %v549 = vpop.f32.mrb[0].mxu0
      %550 = vmatprep.mubr.bf16.mxu0 0
      %551 = vmatmul.mubr.bf16.gmra.mrb[0].mxu0 %v474
      %v552 = vpop.f32.mrb[0].mxu0
      %v553 = vadd.f32 %v450, %v552
      %v554 = vpop.f32.mrb[0].mxu0
      %v555 = vpop.f32.mrb[0].mxu0
      %v556 = vadd.f32 %v450, %v555
      %v557 = vpop.f32.mrb[0].mxu0
      %558 = vmatprep.mubr.bf16.mxu0 0
      %559 = vmatmul.mubr.bf16.gmra.mrb[0].mxu0 %v477
      %v560 = vpop.f32.mrb[0].mxu0
      %v561 = vadd.f32 %v450, %v560
      %v562 = vpop.f32.mrb[0].mxu0
      %v563 = vpop.f32.mrb[0].mxu0
      %v564 = vadd.f32 %v450, %v563
      %v565 = vpop.f32.mrb[0].mxu0
      %566 = vmatprep.mubr.bf16.mxu0 0
      %567 = vmatmul.mubr.bf16.gmra.mrb[0].mxu0 %v480
      %v568 = vpop.f32.mrb[0].mxu0
      %v569 = vadd.f32 %v450, %v568
      %v570 = vpop.f32.mrb[0].mxu0
      %v571 = vpop.f32.mrb[0].mxu0
      %v572 = vadd.f32 %v450, %v571
      %v573 = vpop.f32.mrb[0].mxu0
      %574 = vmatprep.mubr.bf16.mxu0 0
      %575 = vmatmul.mubr.bf16.gmra.mrb[0].mxu0 %v483
      %v576 = vpop.f32.mrb[0].mxu0
      %v577 = vadd.f32 %v450, %v576
      %v578 = vpop.f32.mrb[0].mxu0
      %v579 = vpop.f32.mrb[0].mxu0
      %v580 = vadd.f32 %v450, %v579
      %v581 = vpop.f32.mrb[0].mxu0
      %582 = vmatprep.mubr.bf16.mxu0 0
      %583 = vmatmul.mubr.bf16.gmra.mrb[0].mxu0 %v486
      %v584 = vpop.f32.mrb[0].mxu0
      %v585 = vadd.f32 %v450, %v584
      %v586 = vpop.f32.mrb[0].mxu0
      %v587 = vpop.f32.mrb[0].mxu0
      %v588 = vadd.f32 %v450, %v587
      %v589 = vpop.f32.mrb[0].mxu0
      %590 = vmatprep.mubr.bf16.mxu0 0
      %591 = vmatmul.mubr.bf16.gmra.mrb[0].mxu0 %v489
      %v592 = vpop.f32.mrb[0].mxu0
      %v593 = vadd.f32 %v450, %v592
      %v594 = vpop.f32.mrb[0].mxu0
      %v595 = vpop.f32.mrb[0].mxu0
      %v596 = vadd.f32 %v450, %v595
      %v597 = vpop.f32.mrb[0].mxu0
      %598 = vmatprep.mubr.bf16.mxu0 0
      %599 = vmatmul.mubr.bf16.gmra.mrb[0].mxu0 %v492
      %v600 = vpop.f32.mrb[0].mxu0
      %v601 = vadd.f32 %v450, %v600
      %v602 = vpop.f32.mrb[0].mxu0
      %v603 = vpop.f32.mrb[0].mxu0
      %v604 = vpop.f32.mrb[0].mxu0
      %605 = vdwg.mxu0
      %v606 = vmax.f32 %v529, 0.0
      %v607 = vmax.f32 %v532, 0.0
      %v608 = vmax.f32 %v537, 0.0
      %v609 = vmax.f32 %v540, 0.0
      %v610 = vmax.f32 %v545, 0.0
      %v611 = vmax.f32 %v548, 0.0
      %v612 = vmax.f32 %v553, 0.0
      %v613 = vmax.f32 %v556, 0.0
      %v614 = vmax.f32 %v561, 0.0
      %v615 = vmax.f32 %v564, 0.0
      %v616 = vmax.f32 %v569, 0.0
      %v617 = vmax.f32 %v572, 0.0
      %v618 = vmax.f32 %v577, 0.0
      %v619 = vmax.f32 %v580, 0.0
      %v620 = vmax.f32 %v585, 0.0
      %v621 = vmax.f32 %v588, 0.0
      %v622 = vmax.f32 %v593, 0.0
      %v623 = vmax.f32 %v596, 0.0
      %v624 = vmax.f32 %v601, 0.0
      %v625 = vpack.c.bf16 %v607, %v606
      %v626 = vpack.c.bf16 %v609, %v608
      %v627 = vpack.c.bf16 %v611, %v610
      %v628 = vpack.c.bf16 %v613, %v612
      %v629 = vpack.c.bf16 %v615, %v614
      %v630 = vpack.c.bf16 %v617, %v616
      %v631 = vpack.c.bf16 %v619, %v618
      %v632 = vpack.c.bf16 %v621, %v620
      %v633 = vpack.c.bf16 %v623, %v622
      %v634 = vpack.c.bf16 %v624, %v624
      %v635 = vld [vmem:[%s3] sm:$0xf]
      %v636 = vld [vmem:[%s3 + $0x4] sm:$0xf]
      %v637 = vld [vmem:[%s3 + $0x8] sm:$0xf]
      %v638 = vld [vmem:[%s3 + $0xc] sm:$0xf]
      %v639 = vlaneseq
      %v640 = vshrl.u32 %v639, 7
      %v641 = vsub.s32 2, %v640
      %v642 = vrot.slane %v258, %v641
      %v647 = vunpack.c.l.b16 %v635
      %v648 = vunpack.c.l.b16 %v636
      %v649 = vunpack.c.l.b16 %v637
      %v650 = vunpack.c.l.b16 %v638
      %v651 = vpack.c.b16 %v648, %v647
      %v652 = vpack.c.b16 %v650, %v649
      %v656 = vsel %vm463, %v625, 0
      %v659 = vsel %vm463, %v626, 0
      %v662 = vsel %vm463, %v627, 0
      %v665 = vsel %vm463, %v628, 0
      %v668 = vsel %vm463, %v629, 0
      %v671 = vsel %vm463, %v630, 0
      %v674 = vsel %vm463, %v631, 0
      %v677 = vsel %vm463, %v632, 0
      %v680 = vsel %vm463, %v633, 0
      %v683 = vsel %vm463, %v634, 0
      %685 = vmatprep.subr.bf16.mxu0 0
      %686 = vmatpush1.bf16.msra.mxu0 %v651
      %687 = vmatprep.subr.bf16.mxu0 0
      %688 = vmatpush1.bf16.msra.mxu0 %v652
      %689 = vmatprep.subr.bf16.mxu0 0
      %690 = vmatpush1.bf16.msra.mxu0 0
      %691 = vmatprep.subr.bf16.mxu0 0
      %692 = vmatpush1.bf16.msra.mxu0 0
      %693 = vmatprep.subr.bf16.mxu0 0
      %694 = vmatpush1.bf16.msra.mxu0 0
      %695 = vmatprep.subr.bf16.mxu0 0
      %696 = vmatpush1.bf16.msra.mxu0 0
      %697 = vmatprep.subr.bf16.mxu0 0
      %698 = vmatpush1.bf16.msra.mxu0 0
      %699 = vmatprep.subr.bf16.mxu0 0
      %700 = vmatpush1.bf16.msra.mxu0 0
      %701 = vmatprep.subr.bf16.mxu0 0
      %702 = vmatpush1.bf16.msra.mxu0 0
      %703 = vmatprep.subr.bf16.mxu0 0
      %704 = vmatpush1.bf16.msra.mxu0 0
      %705 = vmatprep.subr.bf16.mxu0 0
      %706 = vmatpush1.bf16.msra.mxu0 0
      %707 = vmatprep.subr.bf16.mxu0 0
      %708 = vmatpush1.bf16.msra.mxu0 0
      %709 = vmatprep.subr.bf16.mxu0 0
      %710 = vmatpush1.bf16.msra.mxu0 0
      %711 = vmatprep.subr.bf16.mxu0 0
      %712 = vmatpush1.bf16.msra.mxu0 0
      %713 = vmatprep.subr.bf16.mxu0 0
      %714 = vmatpush1.bf16.msra.mxu0 0
      %715 = vmatprep.subr.bf16.mxu0 0
      %716 = vmatpush1.bf16.msra.mxu0 0
      %717 = vmatprep.mubr.bf16.mxu0 0
      %718 = vmatmul.mubr.bf16.gmra.mrb[0].mxu0 %v656
      %v719 = vpop.f32.mrb[0].mxu0
      %v720 = vadd.f32 %v642, %v719
      %v721 = vpop.f32.mrb[0].mxu0
      %v722 = vpop.f32.mrb[0].mxu0
      %v723 = vadd.f32 %v642, %v722
      %v724 = vpop.f32.mrb[0].mxu0
      %725 = vmatprep.mubr.bf16.mxu0 0
      %726 = vmatmul.mubr.bf16.gmra.mrb[0].mxu0 %v659
      %v727 = vpop.f32.mrb[0].mxu0
      %v728 = vadd.f32 %v642, %v727
      %v729 = vpop.f32.mrb[0].mxu0
      %v730 = vpop.f32.mrb[0].mxu0
      %v731 = vadd.f32 %v642, %v730
      %v732 = vpop.f32.mrb[0].mxu0
      %733 = vmatprep.mubr.bf16.mxu0 0
      %734 = vmatmul.mubr.bf16.gmra.mrb[0].mxu0 %v662
      %v735 = vpop.f32.mrb[0].mxu0
      %v736 = vadd.f32 %v642, %v735
      %v737 = vpop.f32.mrb[0].mxu0
      %v738 = vpop.f32.mrb[0].mxu0
      %v739 = vadd.f32 %v642, %v738
      %v740 = vpop.f32.mrb[0].mxu0
      %741 = vmatprep.mubr.bf16.mxu0 0
      %742 = vmatmul.mubr.bf16.gmra.mrb[0].mxu0 %v665
      %v743 = vpop.f32.mrb[0].mxu0
      %v744 = vadd.f32 %v642, %v743
      %v745 = vpop.f32.mrb[0].mxu0
      %v746 = vpop.f32.mrb[0].mxu0
      %v747 = vadd.f32 %v642, %v746
      %v748 = vpop.f32.mrb[0].mxu0
      %749 = vmatprep.mubr.bf16.mxu0 0
      %750 = vmatmul.mubr.bf16.gmra.mrb[0].mxu0 %v668
      %v751 = vpop.f32.mrb[0].mxu0
      %v752 = vadd.f32 %v642, %v751
      %v753 = vpop.f32.mrb[0].mxu0
      %v754 = vpop.f32.mrb[0].mxu0
      %v755 = vadd.f32 %v642, %v754
      %v756 = vpop.f32.mrb[0].mxu0
      %757 = vmatprep.mubr.bf16.mxu0 0
      %758 = vmatmul.mubr.bf16.gmra.mrb[0].mxu0 %v671
      %v759 = vpop.f32.mrb[0].mxu0
      %v760 = vadd.f32 %v642, %v759
      %v761 = vpop.f32.mrb[0].mxu0
      %v762 = vpop.f32.mrb[0].mxu0
      %v763 = vadd.f32 %v642, %v762
      %v764 = vpop.f32.mrb[0].mxu0
      %765 = vmatprep.mubr.bf16.mxu0 0
      %766 = vmatmul.mubr.bf16.gmra.mrb[0].mxu0 %v674
      %v767 = vpop.f32.mrb[0].mxu0
      %v768 = vadd.f32 %v642, %v767
      %v769 = vpop.f32.mrb[0].mxu0
      %v770 = vpop.f32.mrb[0].mxu0
      %v771 = vadd.f32 %v642, %v770
      %v772 = vpop.f32.mrb[0].mxu0
      %773 = vmatprep.mubr.bf16.mxu0 0
      %774 = vmatmul.mubr.bf16.gmra.mrb[0].mxu0 %v677
      %v775 = vpop.f32.mrb[0].mxu0
      %v776 = vadd.f32 %v642, %v775
      %v777 = vpop.f32.mrb[0].mxu0
      %v778 = vpop.f32.mrb[0].mxu0
      %v779 = vadd.f32 %v642, %v778
      %v780 = vpop.f32.mrb[0].mxu0
      %781 = vmatprep.mubr.bf16.mxu0 0
      %782 = vmatmul.mubr.bf16.gmra.mrb[0].mxu0 %v680
      %v783 = vpop.f32.mrb[0].mxu0
      %v784 = vadd.f32 %v642, %v783
      %v785 = vpop.f32.mrb[0].mxu0
      %v786 = vpop.f32.mrb[0].mxu0
      %v787 = vadd.f32 %v642, %v786
      %v788 = vpop.f32.mrb[0].mxu0
      %789 = vmatprep.mubr.bf16.mxu0 0
      %790 = vmatmul.mubr.bf16.gmra.mrb[0].mxu0 %v683
      %v791 = vpop.f32.mrb[0].mxu0
      %v792 = vadd.f32 %v642, %v791
      %v793 = vpop.f32.mrb[0].mxu0
      %v794 = vpop.f32.mrb[0].mxu0
      %v795 = vpop.f32.mrb[0].mxu0
      %796 = vdwg.mxu0
      %v797 = vxor.u32 %v720, 2147483648
      %v798 = vxor.u32 %v723, 2147483648
      %v799 = vxor.u32 %v728, 2147483648
      %v800 = vxor.u32 %v731, 2147483648
      %v801 = vxor.u32 %v736, 2147483648
      %v802 = vxor.u32 %v739, 2147483648
      %v803 = vxor.u32 %v744, 2147483648
      %v804 = vxor.u32 %v747, 2147483648
      %v805 = vxor.u32 %v752, 2147483648
      %v806 = vxor.u32 %v755, 2147483648
      %v807 = vxor.u32 %v760, 2147483648
      %v808 = vxor.u32 %v763, 2147483648
      %v809 = vxor.u32 %v768, 2147483648
      %v810 = vxor.u32 %v771, 2147483648
      %v811 = vxor.u32 %v776, 2147483648
      %v812 = vxor.u32 %v779, 2147483648
      %v813 = vxor.u32 %v784, 2147483648
      %v814 = vxor.u32 %v787, 2147483648
      %v815 = vxor.u32 %v792, 2147483648
      %v816 = vmul.f32 %v797, 1.442695
      %v817 = vpow.pop %v816
      %v818 = vmul.f32 %v798, 1.442695
      %v819 = vpow.pop %v818
      %v820 = vmul.f32 %v799, 1.442695
      %v821 = vpow.pop %v820
      %v822 = vmul.f32 %v800, 1.442695
      %v823 = vpow.pop %v822
      %v824 = vmul.f32 %v801, 1.442695
      %v825 = vpow.pop %v824
      %v826 = vmul.f32 %v802, 1.442695
      %v827 = vpow.pop %v826
      %v828 = vmul.f32 %v803, 1.442695
      %v829 = vpow.pop %v828
      %v830 = vmul.f32 %v804, 1.442695
      %v831 = vpow.pop %v830
      %v832 = vmul.f32 %v805, 1.442695
      %v833 = vpow.pop %v832
      %v834 = vmul.f32 %v806, 1.442695
      %v835 = vpow.pop %v834
      %v836 = vmul.f32 %v807, 1.442695
      %v837 = vpow.pop %v836
      %v838 = vmul.f32 %v808, 1.442695
      %v839 = vpow.pop %v838
      %v840 = vmul.f32 %v809, 1.442695
      %v841 = vpow.pop %v840
      %v842 = vmul.f32 %v810, 1.442695
      %v843 = vpow.pop %v842
      %v844 = vmul.f32 %v811, 1.442695
      %v845 = vpow.pop %v844
      %v846 = vmul.f32 %v812, 1.442695
      %v847 = vpow.pop %v846
      %v848 = vmul.f32 %v813, 1.442695
      %v849 = vpow.pop %v848
      %v850 = vmul.f32 %v814, 1.442695
      %v851 = vpow.pop %v850
      %v852 = vmul.f32 %v815, 1.442695
      %v853 = vpow.pop %v852
      %v854 = vadd.f32 %v817, 1.0
      %v855 = vadd.f32 %v819, 1.0
      %v856 = vadd.f32 %v821, 1.0
      %v857 = vadd.f32 %v823, 1.0
      %v858 = vadd.f32 %v825, 1.0
      %v859 = vadd.f32 %v827, 1.0
      %v860 = vadd.f32 %v829, 1.0
      %v861 = vadd.f32 %v831, 1.0
      %v862 = vadd.f32 %v833, 1.0
      %v863 = vadd.f32 %v835, 1.0
      %v864 = vadd.f32 %v837, 1.0
      %v865 = vadd.f32 %v839, 1.0
      %v866 = vadd.f32 %v841, 1.0
      %v867 = vadd.f32 %v843, 1.0
      %v868 = vadd.f32 %v845, 1.0
      %v869 = vadd.f32 %v847, 1.0
      %v870 = vadd.f32 %v849, 1.0
      %v871 = vadd.f32 %v851, 1.0
      %v872 = vadd.f32 %v853, 1.0
      %v873 = vrcp.pop %v854
      %v874 = vmul.f32 1.0, %v873
      %v875 = vrcp.pop %v855
      %v876 = vmul.f32 1.0, %v875
      %v877 = vrcp.pop %v856
      %v878 = vmul.f32 1.0, %v877
      %v879 = vrcp.pop %v857
      %v880 = vmul.f32 1.0, %v879
      %v881 = vrcp.pop %v858
      %v882 = vmul.f32 1.0, %v881
      %v883 = vrcp.pop %v859
      %v884 = vmul.f32 1.0, %v883
      %v885 = vrcp.pop %v860
      %v886 = vmul.f32 1.0, %v885
      %v887 = vrcp.pop %v861
      %v888 = vmul.f32 1.0, %v887
      %v889 = vrcp.pop %v862
      %v890 = vmul.f32 1.0, %v889
      %v891 = vrcp.pop %v863
      %v892 = vmul.f32 1.0, %v891
      %v893 = vrcp.pop %v864
      %v894 = vmul.f32 1.0, %v893
      %v895 = vrcp.pop %v865
      %v896 = vmul.f32 1.0, %v895
      %v897 = vrcp.pop %v866
      %v898 = vmul.f32 1.0, %v897
      %v899 = vrcp.pop %v867
      %v900 = vmul.f32 1.0, %v899
      %v901 = vrcp.pop %v868
      %v902 = vmul.f32 1.0, %v901
      %v903 = vrcp.pop %v869
      %v904 = vmul.f32 1.0, %v903
      %v905 = vrcp.pop %v870
      %v906 = vmul.f32 1.0, %v905
      %v907 = vrcp.pop %v871
      %v908 = vmul.f32 1.0, %v907
      %v909 = vrcp.pop %v872
      %v910 = vmul.f32 1.0, %v909
      %vm911 = vcmask 64512
      %912 = vst.msk [vmem:[%s226] sm:$0xff] %vm911, %v874
      %913 = vst.msk [vmem:[%s226 + $0x8] sm:$0xff] %vm911, %v876
      %914 = vst.msk [vmem:[%s226 + $0x10] sm:$0xff] %vm911, %v878
      %915 = vst.msk [vmem:[%s226 + $0x18] sm:$0xff] %vm911, %v880
      %916 = vst.msk [vmem:[%s226 + $0x20] sm:$0xff] %vm911, %v882
      %917 = vst.msk [vmem:[%s226 + $0x28] sm:$0xff] %vm911, %v884
      %918 = vst.msk [vmem:[%s226 + $0x30] sm:$0xff] %vm911, %v886
      %919 = vst.msk [vmem:[%s226 + $0x38] sm:$0xff] %vm911, %v888
      %920 = vst.msk [vmem:[%s226 + $0x40] sm:$0xff] %vm911, %v890
      %921 = vst.msk [vmem:[%s226 + $0x48] sm:$0xff] %vm911, %v892
      %922 = vst.msk [vmem:[%s226 + $0x50] sm:$0xff] %vm911, %v894
      %923 = vst.msk [vmem:[%s226 + $0x58] sm:$0xff] %vm911, %v896
      %924 = vst.msk [vmem:[%s226 + $0x60] sm:$0xff] %vm911, %v898
      %925 = vst.msk [vmem:[%s226 + $0x68] sm:$0xff] %vm911, %v900
      %926 = vst.msk [vmem:[%s226 + $0x70] sm:$0xff] %vm911, %v902
      %927 = vst.msk [vmem:[%s226 + $0x78] sm:$0xff] %vm911, %v904
      %928 = vst.msk [vmem:[%s226 + $0x80] sm:$0xff] %vm911, %v906
      %929 = vst.msk [vmem:[%s226 + $0x88] sm:$0xff] %vm911, %v908
      %930 = vst.msk [vmem:[%s226 + $0x90] sm:$0xff] %vm911, %v910
      %s931 = smul.u32 19, %s16
      %p932 = scmp.lt.s32.totalorder %s931, 37
      %s933 = scalar_select %p932, %s931, 37
      %s934 = smul.addr %s933, 8
      %s935 = scalar_lea.vmem %s5, %s934
      // Predicated region
      $region41: #{tpu_custom_call.1} parent=39 // pred_check
        %p936 = pneg %p144
      $region42: #{tpu_custom_call.1} parent=39 // pred_check_branch
        %938 = sbr.rel (%p936) target = $region44
      $region43: #{tpu_custom_call.1} parent=39 // pred_region
        %s939 = smul.u32 19, %s16
      $region44: #{tpu_custom_call.1} parent=39 // pred_fallthru
        _
    $region40: #{tpu_custom_call.1} parent=5 // pred_fallthru
      _
    %p940 = scmp.le.s32.totalorder 2, %s11
    // Predicated region
    $region45: #{tpu_custom_call.1} parent=5 // pred_check
      %p941 = pneg %p940
    $region46: #{tpu_custom_call.1} parent=5 // pred_check_branch
      %943 = sbr.rel (%p941) target = $region48
    $region47: #{tpu_custom_call.1} parent=5 // pred_region
      %s944 = ssub.s32 %s11, 2
      // Predicated region
      $region49: #{tpu_custom_call.1} parent=47 // pred_check
        %p945 = pneg %p150
      $region50: #{tpu_custom_call.1} parent=47 // pred_check_branch
        %947 = sbr.rel (%p945) target = $region52
      $region51: #{tpu_custom_call.1} parent=47 // pred_region
        %s948 = smul.u32 19, %s17
        %p949 = scmp.lt.s32.totalorder %s948, 37
        %s950 = scalar_select %p949, %s948, 37
        %s951 = smul.addr %s950, 8
        %s952 = scalar_lea.vmem %s5, %s951
      $region52: #{tpu_custom_call.1} parent=47 // pred_fallthru
        _
    $region48: #{tpu_custom_call.1} parent=5 // pred_fallthru
      _
  $region6: #{tpu_custom_call.1} parent=0 // loop_footer
    %s15 = sadd.s32 1, %s11
  $region7: #{tpu_custom_call.1} parent=0 // loop_footer_branch
    %10 = sbr.rel target = $region3
  $region8: #{tpu_custom_call.1} parent=0 // loop_exit
    _

</llo_original>
